<compile_context>
chip_gen: v7x
topology: tpu7x:2x2x1
jax: 0.10.0
libtpu: 0.0.40
codegen_flags: <defaults>
</compile_context>

<pallas_src>
import functools

import jax
import jax.numpy as jnp
from jax import lax
from jax.experimental import pallas as pl
from jax.experimental.pallas import tpu as pltpu

LANES = 128
MAX_ROW_TILE = 2048   # (2048,128) f32 = 1 MiB/input/tile; 3 inputs x 2 bufs = 6 MiB VMEM
MAX_CORES = 2         # leading 'parallel' axis -> both TCs on v7x; plain loop on v5e/v6e


def _round_up(x, m):
    return ((x + m - 1) // m) * m


def _masked_mse_kernel(yp_ref, yt_ref, m_ref, out_ref, acc_ref, *,
                       rows, row_tile, blocks_per_core):
    c = pl.program_id(0)   # core-split axis ("parallel")
    i = pl.program_id(1)   # sequential reduction axis ("arbitrary")

    @pl.when(i == 0)
    def _():
        acc_ref[...] = jnp.zeros_like(acc_ref)

    diff = yt_ref[...].astype(jnp.float32) - yp_ref[...].astype(jnp.float32)
    sq = diff * diff * m_ref[...].astype(jnp.float32)

    vblock = c * blocks_per_core + i      # un-clamped virtual block id
    row_start = vblock * row_tile         # first (virtual) row of this tile

    # Fast path: every row of this tile is in range -> no mask work at all.
    @pl.when(row_start + row_tile <= rows)
    def _():
        acc_ref[...] += jnp.sum(sq, axis=0, keepdims=True)

    # Cold path: ragged last block of the array, or a fully out-of-range block
    # that the index_map clamped onto real data (avoid double counting).  Any
    # lane-level ragged tail was zero-padded in the wrapper (mask = 0 there),
    # so a row-granular mask is sufficient.
    @pl.when(row_start + row_tile > rows)
    def _():
        row_ids = lax.broadcasted_iota(jnp.int32, (row_tile, LANES), 0)
        valid = (row_start + row_ids) < rows
        acc_ref[...] += jnp.sum(jnp.where(valid, sq, 0.0), axis=0, keepdims=True)

    @pl.when(i == pl.num_programs(1) - 1)
    def _():
        out_ref[...] = acc_ref[...]


def regression_loss(y_pred, y_true, mask):
    """Pallas TPU implementation of RegressionLoss.forward: mean((yt - yp)**2 * mask)."""
    assert y_pred.shape == y_true.shape == mask.shape
    total_n = int(y_pred.size)

    def _flat2d(x):
        flat = jnp.ravel(x)                      # layout no-op, no HBM copy
        rem = total_n % LANES
        if rem:
            # TODO(synk): only hit when numel % 128 != 0 — pads a tiny tail so
            # the array can be viewed as (rows, 128) lanes (mask padded with 0).
            flat = jnp.concatenate(
                [flat, jnp.zeros((LANES - rem,), dtype=flat.dtype)])
        return flat.reshape(-1, LANES)

    yp2 = _flat2d(y_pred)
    yt2 = _flat2d(y_true)
    m2 = _flat2d(mask)
    rows = yp2.shape[0]

    row_tile = min(MAX_ROW_TILE, _round_up(rows, 8))
    num_blocks = pl.cdiv(rows, row_tile)
    num_cores = min(MAX_CORES, num_blocks)       # no duplicated tile reads for tiny inputs
    blocks_per_core = pl.cdiv(num_blocks, num_cores)

    def _in_map(c, i):
        # Clamp so no DMA ever targets a fully out-of-range block; the kernel's
        # row mask zeroes any double-covered data.
        return (jnp.minimum(c * blocks_per_core + i, num_blocks - 1), 0)

    in_spec = pl.BlockSpec((row_tile, LANES), _in_map)

    kernel = functools.partial(
        _masked_mse_kernel,
        rows=rows, row_tile=row_tile, blocks_per_core=blocks_per_core)

    partial_sums = pl.pallas_call(
        kernel,
        out_shape=jax.ShapeDtypeStruct((num_cores, LANES), jnp.float32),
        grid_spec=pltpu.PrefetchScalarGridSpec(
            num_scalar_prefetch=0,
            grid=(num_cores, blocks_per_core),
            in_specs=[in_spec, in_spec, in_spec],   # y_pred, y_true, mask
            out_specs=pl.BlockSpec((1, LANES), lambda c, i: (c, 0)),
            scratch_shapes=[pltpu.VMEM((1, LANES), jnp.float32)],
        ),
        compiler_params=pltpu.CompilerParams(
            dimension_semantics=("parallel", "arbitrary"),
        ),
    )(yp2, yt2, m2)

    # Single final cross-lane/cross-core reduction + mean divide (true N).
    return jnp.sum(partial_sums) / jnp.float32(total_n)


if __name__ == "__main__":
    key = jax.random.PRNGKey(0)
    k1, k2, k3 = jax.random.split(key, 3)

    # Small NCHW shape consistent with the module (elementwise + global mean).
    shape = (2, 4, 16, 16)
    y_pred = jax.random.normal(k1, shape, dtype=jnp.float32)
    y_true = jax.random.normal(k2, shape, dtype=jnp.float32)
    mask = (jax.random.uniform(k3, shape) > 0.5).astype(jnp.float32)

    loss = jax.jit(regression_loss)(y_pred, y_true, mask)
    loss = jax.block_until_ready(loss)

    # Reference check in plain JAX
    ref = jnp.mean((y_true - y_pred) ** 2 * mask)
    assert jnp.allclose(loss, ref, rtol=1e-5, atol=1e-6), (loss, ref)

    print("KERNEL_OK")
</pallas_src>

<mosaic_0001>
module attributes {stable_mosaic.version = 11 : i64} {
  func.func @_masked_mse_kernel(%arg0: i32, %arg1: i32, %arg2: memref<16x128xf32, #tpu.memory_space<vmem>>, %arg3: memref<16x128xf32, #tpu.memory_space<vmem>>, %arg4: memref<16x128xf32, #tpu.memory_space<vmem>>, %arg5: memref<1x128xf32, #tpu.memory_space<vmem>>, %arg6: memref<1x128xf32, #tpu.memory_space<vmem>>) attributes {dimension_semantics = [#tpu.dimension_semantics<parallel>, #tpu.dimension_semantics<arbitrary>], iteration_bounds = array<i64: 1, 1>, scalar_prefetch = 0 : i64, scratch_operands = 1 : i64, tpu.core_type = #tpu.core_type<tc>, window_params = [{transform_indices = @transform_0, window_bounds = array<i64: 16, 128>}, {transform_indices = @transform_1, window_bounds = array<i64: 16, 128>}, {transform_indices = @transform_2, window_bounds = array<i64: 16, 128>}, {transform_indices = @transform_3, window_bounds = array<i64: 1, 128>}]} {
    %c0_i32 = arith.constant 0 : i32
    %0 = arith.cmpi eq, %arg1, %c0_i32 : i32
    %1 = arith.extui %0 : i1 to i32
    %c0_i32_0 = arith.constant 0 : i32
    %2 = arith.cmpi ne, %1, %c0_i32_0 : i32
    scf.if %2 {
      %cst = arith.constant 0.000000e+00 : f32
      %23 = vector.broadcast %cst : f32 to vector<1x128xf32>
      %c0_14 = arith.constant 0 : index
      %c0_15 = arith.constant 0 : index
      %24 = vector.load %arg6[%c0_14, %c0_15] : memref<1x128xf32, #tpu.memory_space<vmem>>, vector<1x128xf32>
      tpu.vector_store %arg6[%c0_14, %c0_15], %23 {strides = array<i32>} : memref<1x128xf32, #tpu.memory_space<vmem>>, vector<1x128xf32>,
    } else {
    }
    %c0 = arith.constant 0 : index
    %c0_1 = arith.constant 0 : index
    %3 = vector.load %arg3[%c0, %c0_1] : memref<16x128xf32, #tpu.memory_space<vmem>>, vector<16x128xf32>
    %c0_2 = arith.constant 0 : index
    %c0_3 = arith.constant 0 : index
    %4 = vector.load %arg2[%c0_2, %c0_3] : memref<16x128xf32, #tpu.memory_space<vmem>>, vector<16x128xf32>
    %5 = arith.subf %3, %4 : vector<16x128xf32>
    %6 = arith.mulf %5, %5 : vector<16x128xf32>
    %c0_4 = arith.constant 0 : index
    %c0_5 = arith.constant 0 : index
    %7 = vector.load %arg4[%c0_4, %c0_5] : memref<16x128xf32, #tpu.memory_space<vmem>>, vector<16x128xf32>
    %8 = arith.mulf %6, %7 : vector<16x128xf32>
    %c1_i32 = arith.constant 1 : i32
    %9 = arith.muli %arg0, %c1_i32 : i32
    %10 = arith.addi %9, %arg1 : i32
    %c16_i32 = arith.constant 16 : i32
    %11 = arith.muli %10, %c16_i32 : i32
    %c16_i32_6 = arith.constant 16 : i32
    %12 = arith.addi %11, %c16_i32_6 : i32
    %c16_i32_7 = arith.constant 16 : i32
    %13 = arith.cmpi sle, %12, %c16_i32_7 : i32
    %14 = arith.extui %13 : i1 to i32
    %c0_i32_8 = arith.constant 0 : i32
    %15 = arith.cmpi ne, %14, %c0_i32_8 : i32
    scf.if %15 {
      %c0_14 = arith.constant 0 : index
      %c0_15 = arith.constant 0 : index
      %23 = vector.load %arg6[%c0_14, %c0_15] : memref<1x128xf32, #tpu.memory_space<vmem>>, vector<1x128xf32>
      %cst = arith.constant dense<0.000000e+00> : vector<128xf32>
      %24 = vector.multi_reduction <add>, %8, %cst [0] : vector<16x128xf32> to vector<128xf32>
      %25 = vector.shape_cast %24 : vector<128xf32> to vector<1x128xf32>
      %26 = arith.addf %23, %25 : vector<1x128xf32>
      %c0_16 = arith.constant 0 : index
      %c0_17 = arith.constant 0 : index
      %27 = vector.load %arg6[%c0_16, %c0_17] : memref<1x128xf32, #tpu.memory_space<vmem>>, vector<1x128xf32>
      tpu.vector_store %arg6[%c0_16, %c0_17], %26 {strides = array<i32>} : memref<1x128xf32, #tpu.memory_space<vmem>>, vector<1x128xf32>,
    } else {
    }
    %c16_i32_9 = arith.constant 16 : i32
    %16 = arith.addi %11, %c16_i32_9 : i32
    %c16_i32_10 = arith.constant 16 : i32
    %17 = arith.cmpi sgt, %16, %c16_i32_10 : i32
    %18 = arith.extui %17 : i1 to i32
    %c0_i32_11 = arith.constant 0 : i32
    %19 = arith.cmpi ne, %18, %c0_i32_11 : i32
    scf.if %19 {
      %23 = tpu.iota {dimensions = array<i32: 0>} : vector<16x128xi32>
      %24 = vector.broadcast %11 : i32 to vector<16x128xi32>
      %25 = arith.addi %24, %23 : vector<16x128xi32>
      %c16_i32_14 = arith.constant 16 : i32
      %26 = vector.broadcast %c16_i32_14 : i32 to vector<16x128xi32>
      %27 = arith.cmpi slt, %25, %26 : vector<16x128xi32>
      %c0_15 = arith.constant 0 : index
      %c0_16 = arith.constant 0 : index
      %28 = vector.load %arg6[%c0_15, %c0_16] : memref<1x128xf32, #tpu.memory_space<vmem>>, vector<1x128xf32>
      %cst = arith.constant 0.000000e+00 : f32
      %29 = vector.broadcast %cst : f32 to vector<16x128xf32>
      %30 = arith.select %27, %8, %29 : vector<16x128xi1>, vector<16x128xf32>
      %cst_17 = arith.constant dense<0.000000e+00> : vector<128xf32>
      %31 = vector.multi_reduction <add>, %30, %cst_17 [0] : vector<16x128xf32> to vector<128xf32>
      %32 = vector.shape_cast %31 : vector<128xf32> to vector<1x128xf32>
      %33 = arith.addf %28, %32 : vector<1x128xf32>
      %c0_18 = arith.constant 0 : index
      %c0_19 = arith.constant 0 : index
      %34 = vector.load %arg6[%c0_18, %c0_19] : memref<1x128xf32, #tpu.memory_space<vmem>>, vector<1x128xf32>
      tpu.vector_store %arg6[%c0_18, %c0_19], %33 {strides = array<i32>} : memref<1x128xf32, #tpu.memory_space<vmem>>, vector<1x128xf32>,
    } else {
    }
    %c0_i32_12 = arith.constant 0 : i32
    %20 = arith.cmpi eq, %arg1, %c0_i32_12 : i32
    %21 = arith.extui %20 : i1 to i32
    %c0_i32_13 = arith.constant 0 : i32
    %22 = arith.cmpi ne, %21, %c0_i32_13 : i32
    scf.if %22 {
      %c0_14 = arith.constant 0 : index
      %c0_15 = arith.constant 0 : index
      %23 = vector.load %arg6[%c0_14, %c0_15] : memref<1x128xf32, #tpu.memory_space<vmem>>, vector<1x128xf32>
      %c0_16 = arith.constant 0 : index
      %c0_17 = arith.constant 0 : index
      %24 = vector.load %arg5[%c0_16, %c0_17] : memref<1x128xf32, #tpu.memory_space<vmem>>, vector<1x128xf32>
      tpu.vector_store %arg5[%c0_16, %c0_17], %23 {strides = array<i32>} : memref<1x128xf32, #tpu.memory_space<vmem>>, vector<1x128xf32>,
    } else {
    }
    return
  }
  func.func @transform_0(%arg0: i32, %arg1: i32) -> (i32, i32) {
    %c1_i32 = arith.constant 1 : i32
    %0 = arith.muli %arg0, %c1_i32 : i32
    %1 = arith.addi %0, %arg1 : i32
    %c0_i32 = arith.constant 0 : i32
    %2 = arith.minsi %1, %c0_i32 : i32
    %c0_i32_0 = arith.constant 0 : i32
    %c0_i32_1 = arith.constant 0 : i32
    return %2, %c0_i32_0 : i32, i32
  }
  func.func @transform_1(%arg0: i32, %arg1: i32) -> (i32, i32) {
    %c1_i32 = arith.constant 1 : i32
    %0 = arith.muli %arg0, %c1_i32 : i32
    %1 = arith.addi %0, %arg1 : i32
    %c0_i32 = arith.constant 0 : i32
    %2 = arith.minsi %1, %c0_i32 : i32
    %c0_i32_0 = arith.constant 0 : i32
    %c0_i32_1 = arith.constant 0 : i32
    return %2, %c0_i32_0 : i32, i32
  }
  func.func @transform_2(%arg0: i32, %arg1: i32) -> (i32, i32) {
    %c1_i32 = arith.constant 1 : i32
    %0 = arith.muli %arg0, %c1_i32 : i32
    %1 = arith.addi %0, %arg1 : i32
    %c0_i32 = arith.constant 0 : i32
    %2 = arith.minsi %1, %c0_i32 : i32
    %c0_i32_0 = arith.constant 0 : i32
    %c0_i32_1 = arith.constant 0 : i32
    return %2, %c0_i32_0 : i32, i32
  }
  func.func @transform_3(%arg0: i32, %arg1: i32) -> (i32, i32) {
    %c0_i32 = arith.constant 0 : i32
    %c0_i32_0 = arith.constant 0 : i32
    return %arg0, %c0_i32 : i32, i32
  }
}

</mosaic_0001>

<llo_original>
// kernel: regression_loss.1
$region0: #{regression_loss.1}
  #allocation0 [shape = 'u32[]', space=smem, size = 0x4, offset = 0x4, fixed_abs, tag = 'smem constant byte address 0x4 - core index']
  #allocation1 [shape = 'u32[144,128]{1,0:T(1,128)}', space=vmem, size = 0x12000, scoped, tag = 'internal scratch']
  #allocation2 [shape = 'f32[1,128]{1,0:T(1,128)}', space=vmem, size = 0x200, scoped, tag = 'scratch operand']
  %s0 = inlined_call_operand.vmem [shape: f32[16,128], index: 0, kind: input, shape index: {}]
  %s1 = inlined_call_operand.vmem [shape: f32[16,128], index: 1, kind: input, shape index: {}]
  %s2 = inlined_call_operand.vmem [shape: f32[16,128], index: 2, kind: input, shape index: {}]
  %s3 = inlined_call_operand.vmem [shape: f32[1,128], index: 3, kind: output, shape index: {}]
  %s4 = sld [smem:[#allocation0]]
  $region38: #{regression_loss.1} parent=0
    _
  %s6 = ssub.s32 1, %s4
  %s7 = scalar_select 0, %s6, %s4
  // Predicated region
  $region2: #{regression_loss.1} parent=0 // pred_check
    _
  $region3: #{regression_loss.1} parent=0 // pred_check_branch
    %9 = sbr.rel (0) target = $region5
  $region4: #{regression_loss.1} parent=0 // pred_region
    %s10 = sadd.s32 0, 0
    %p11 = scmp.lt.s32.totalorder %s10, 0
    %s12 = scalar_select %p11, %s10, 0
    %s13 = smul.u32 2, %s12
    %p14 = scmp.lt.s32.totalorder %s13, 1
    %s15 = scalar_select %p14, %s13, 1
    %s16 = smul.addr %s15, 8
    %s17 = scalar_lea.vmem %s0, %s16
    %s18 = sadd.s32 0, 0
    %p19 = scmp.lt.s32.totalorder %s18, 0
    %s20 = scalar_select %p19, %s18, 0
    %s21 = smul.u32 2, %s20
  $region5: #{regression_loss.1} parent=0 // pred_fallthru
    _
  // Predicated region
  $region6: #{regression_loss.1} parent=0 // pred_check
    _
  $region7: #{regression_loss.1} parent=0 // pred_check_branch
    %23 = sbr.rel (0) target = $region9
  $region8: #{regression_loss.1} parent=0 // pred_region
    %s24 = sadd.s32 0, 0
    %p25 = scmp.lt.s32.totalorder %s24, 0
    %s26 = scalar_select %p25, %s24, 0
    %s27 = smul.u32 2, %s26
    %p28 = scmp.lt.s32.totalorder %s27, 1
    %s29 = scalar_select %p28, %s27, 1
    %s30 = smul.addr %s29, 8
    %s31 = scalar_lea.vmem %s1, %s30
    %s32 = sadd.s32 0, 0
    %p33 = scmp.lt.s32.totalorder %s32, 0
    %s34 = scalar_select %p33, %s32, 0
    %s35 = smul.u32 2, %s34
  $region9: #{regression_loss.1} parent=0 // pred_fallthru
    _
  // Predicated region
  $region10: #{regression_loss.1} parent=0 // pred_check
    _
  $region11: #{regression_loss.1} parent=0 // pred_check_branch
    %37 = sbr.rel (0) target = $region13
  $region12: #{regression_loss.1} parent=0 // pred_region
    %s38 = sadd.s32 0, 0
    %p39 = scmp.lt.s32.totalorder %s38, 0
    %s40 = scalar_select %p39, %s38, 0
    %s41 = smul.u32 2, %s40
    %p42 = scmp.lt.s32.totalorder %s41, 1
    %s43 = scalar_select %p42, %s41, 1
    %s44 = smul.addr %s43, 8
    %s45 = scalar_lea.vmem %s2, %s44
    %s46 = sadd.s32 0, 0
    %p47 = scmp.lt.s32.totalorder %s46, 0
    %s48 = scalar_select %p47, %s46, 0
    %s49 = smul.u32 2, %s48
  $region13: #{regression_loss.1} parent=0 // pred_fallthru
    _
  %s50 = sadd.s32 0, 0
  %p51 = scmp.lt.s32.totalorder %s50, 0
  %s52 = scalar_select %p51, %s50, 0
  %s53 = smul.u32 2, %s52
  %p54 = scmp.lt.s32.totalorder %s53, 1
  %s55 = scalar_select %p54, %s53, 1
  %s56 = smul.addr %s55, 8
  %s57 = scalar_lea.vmem %s0, %s56
  %s58 = sadd.s32 0, 0
  %p59 = scmp.lt.s32.totalorder %s58, 0
  %s60 = scalar_select %p59, %s58, 0
  %s61 = smul.u32 2, %s60
  %p62 = scmp.lt.s32.totalorder %s61, 1
  %s63 = scalar_select %p62, %s61, 1
  %s64 = smul.addr %s63, 8
  %s65 = scalar_lea.vmem %s1, %s64
  %s66 = sadd.s32 0, 0
  %p67 = scmp.lt.s32.totalorder %s66, 0
  %s68 = scalar_select %p67, %s66, 0
  %s69 = smul.u32 2, %s68
  %p70 = scmp.lt.s32.totalorder %s69, 1
  %s71 = scalar_select %p70, %s69, 1
  %s72 = smul.addr %s71, 8
  %s73 = scalar_lea.vmem %s2, %s72
  %s74 = sadd.s32 0, 0
  %p75 = scmp.lt.s32.totalorder %s74, 0
  %s76 = scalar_select %p75, %s74, 0
  %s77 = smul.u32 2, %s76
  %p78 = scmp.lt.s32.totalorder %s77, 1
  %s79 = scalar_select %p78, %s77, 1
  %s80 = smul.addr %s79, 8
  %s81 = scalar_lea.vmem %s0, %s80
  %s82 = sadd.s32 0, 0
  %p83 = scmp.lt.s32.totalorder %s82, 0
  %s84 = scalar_select %p83, %s82, 0
  %s85 = smul.u32 2, %s84
  %s86 = sadd.s32 0, 0
  %p87 = scmp.lt.s32.totalorder %s86, 0
  %s88 = scalar_select %p87, %s86, 0
  %s89 = smul.u32 2, %s88
  %p90 = scmp.lt.s32.totalorder %s89, 1
  %s91 = scalar_select %p90, %s89, 1
  %s92 = smul.addr %s91, 8
  %s93 = scalar_lea.vmem %s1, %s92
  %s94 = sadd.s32 0, 0
  %p95 = scmp.lt.s32.totalorder %s94, 0
  %s96 = scalar_select %p95, %s94, 0
  %s97 = smul.u32 2, %s96
  %s98 = sadd.s32 0, 0
  %p99 = scmp.lt.s32.totalorder %s98, 0
  %s100 = scalar_select %p99, %s98, 0
  %s101 = smul.u32 2, %s100
  %p102 = scmp.lt.s32.totalorder %s101, 1
  %s103 = scalar_select %p102, %s101, 1
  %s104 = smul.addr %s103, 8
  %s105 = scalar_lea.vmem %s2, %s104
  %s106 = sadd.s32 0, 0
  %p107 = scmp.lt.s32.totalorder %s106, 0
  %s108 = scalar_select %p107, %s106, 0
  %s109 = smul.u32 2, %s108
  %p110 = scmp.eq.s32.totalorder 0, 0
  // Predicated region
  $region14: #{regression_loss.1} parent=0 // pred_check
    %p111 = pneg %p110
  $region15: #{regression_loss.1} parent=0 // pred_check_branch
    %113 = sbr.rel (%p111) target = $region17
  $region16: #{regression_loss.1} parent=0 // pred_region
    %114 = vst [vmem:[#allocation2] sm:$0x1] 0.0
  $region17: #{regression_loss.1} parent=0 // pred_fallthru
    _
  %v115 = vld [vmem:[%s93] sm:$0xff]
  %v116 = vld [vmem:[%s93 + $0x8] sm:$0xff]
  %v117 = vld [vmem:[%s81] sm:$0xff]
  %v118 = vld [vmem:[%s81 + $0x8] sm:$0xff]
  %v119 = vsub.f32 %v115, %v117
  %v120 = vsub.f32 %v116, %v118
  %v121 = vmul.f32 %v119, %v119
  %v122 = vmul.f32 %v120, %v120
  %v123 = vld [vmem:[%s105] sm:$0xff]
  %v124 = vld [vmem:[%s105 + $0x8] sm:$0xff]
  %v125 = vmul.f32 %v121, %v123
  %v126 = vmul.f32 %v122, %v124
  %s127 = sadd.s32 0, 0
  %s128 = smul.u32 %s127, 16
  %s129 = sadd.s32 %s128, 16
  %p130 = scmp.le.s32.totalorder %s129, 16
  // Predicated region
  $region18: #{regression_loss.1} parent=0 // pred_check
    %p131 = pneg %p130
  $region19: #{regression_loss.1} parent=0 // pred_check_branch
    %133 = sbr.rel (%p131) target = $region21
  $region20: #{regression_loss.1} parent=0 // pred_region
    %v134 = vld [vmem:[#allocation2] sm:$0x1]
    %v135 = vadd.f32 %v125, %v126
    %v136 = vrot.slane %v135, 4
    %v137 = vadd.f32 %v135, %v136
    %v138 = vrot.slane %v137, 2
    %v139 = vadd.f32 %v137, %v138
    %v140 = vrot.slane %v139, 1
    %v141 = vadd.f32 %v139, %v140
    %v142 = vadd.f32 %v134, %v141
    %143 = vst [vmem:[#allocation2] sm:$0x1] %v142
  $region21: #{regression_loss.1} parent=0 // pred_fallthru
    _
  %p144 = scmp.gt.s32.totalorder %s129, 16
  // Predicated region
  $region22: #{regression_loss.1} parent=0 // pred_check
    %p145 = pneg %p144
  $region23: #{regression_loss.1} parent=0 // pred_check_branch
    %147 = sbr.rel (%p145) target = $region25
  $region24: #{regression_loss.1} parent=0 // pred_region
    %v148 = vlaneseq
    %v149 = vshrl.u32 %v148, 7
    %v150 = vadd.s32 %v149, 8
    %v151 = vstv %s128
    %v152 = vadd.s32 %v151, %v149
    %v153 = vadd.s32 %v151, %v150
    %vm154 = vcmp.lt.s32.totalorder %v152, 16
    %vm155 = vcmp.lt.s32.totalorder %v153, 16
    %v156 = vld [vmem:[#allocation2] sm:$0x1]
    %v157 = vsel %vm154, %v125, 0.0
    %v158 = vsel %vm155, %v126, 0.0
    %v159 = vadd.f32 %v157, %v158
    %v160 = vrot.slane %v159, 4
    %v161 = vadd.f32 %v159, %v160
    %v162 = vrot.slane %v161, 2
    %v163 = vadd.f32 %v161, %v162
    %v164 = vrot.slane %v163, 1
    %v165 = vadd.f32 %v163, %v164
    %v166 = vadd.f32 %v156, %v165
    %167 = vst [vmem:[#allocation2] sm:$0x1] %v166
  $region25: #{regression_loss.1} parent=0 // pred_fallthru
    _
  // Predicated region
  $region26: #{regression_loss.1} parent=0 // pred_check
    %p168 = pneg %p110
  $region27: #{regression_loss.1} parent=0 // pred_check_branch
    %170 = sbr.rel (%p168) target = $region29
  $region28: #{regression_loss.1} parent=0 // pred_region
    %v171 = vld [vmem:[#allocation2] sm:$0x1]
    %172 = vst [vmem:[%s3] sm:$0x1] %v171
  $region29: #{regression_loss.1} parent=0 // pred_fallthru
    _
  // Predicated region
  $region30: #{regression_loss.1} parent=0 // pred_check
    _
  $region31: #{regression_loss.1} parent=0 // pred_check_branch
    %174 = sbr.rel (0) target = $region33
  $region32: #{regression_loss.1} parent=0 // pred_region
    _
  $region33: #{regression_loss.1} parent=0 // pred_fallthru
    _
  // Predicated region
  $region34: #{regression_loss.1} parent=0 // pred_check
    _
  $region35: #{regression_loss.1} parent=0 // pred_check_branch
    %176 = sbr.rel (0) target = $region37
  $region36: #{regression_loss.1} parent=0 // pred_region
    _
  $region37: #{regression_loss.1} parent=0 // pred_fallthru
    _

</llo_original>
